<compile_context>
chip_gen: v7x
topology: tpu7x:2x2x1
jax: 0.10.0
libtpu: 0.0.40
codegen_flags: <defaults>
</compile_context>

<pallas_src>
import math

import jax
import jax.numpy as jnp
from jax.experimental import pallas as pl
from jax.experimental.pallas import tpu as pltpu

NUM_HEADS = 8  # nn.MultiheadAttention(num_heads=8)


def _round_up(n, m):
    return pl.cdiv(n, m) * m


# ----------------------------------- kernel -----------------------------------

def _fused_mlp3_kernel(x_ref, wa_ref, wb_ref, wc_ref, bias_ref, out_ref):
    """out = ReLU(ReLU(x@Wa+ba) @ Wb + bb) @ Wc + bc.

    All matmuls accumulate in f32 on the MXU; bias add / ReLU stay in f32 on
    the VPU (v5e has no bf16 VALU path).  The activation cast happens here in
    VMEM, not in the wrapper.
    """
    f32 = jnp.float32
    da = wa_ref.shape[1]
    db = wb_ref.shape[1]

    b_a = bias_ref[0:1, :da]        # (1, da)
    b_b = bias_ref[1:2, :db]        # (1, db)
    b_c = bias_ref[2:3, 0:1]        # (1, 1)

    x = x_ref[...].astype(wa_ref.dtype)
    h = jnp.dot(x, wa_ref[...], preferred_element_type=f32) + b_a
    h = jnp.maximum(h, 0.0)         # ReLU (Dropout = identity in eval)

    h = jnp.dot(h.astype(wb_ref.dtype), wb_ref[...],
                preferred_element_type=f32) + b_b
    h = jnp.maximum(h, 0.0)

    y = jnp.dot(h.astype(wc_ref.dtype), wc_ref[...],
                preferred_element_type=f32) + b_c
    out_ref[...] = y.astype(out_ref.dtype)


# ----------------------------------- wrapper -----------------------------------

def _fused_forward(x, wa, wb, wc, bias_pack, *, tb=None):
    """Batch-tiled 3-stage MLP.  Returns (N, 1) float32."""
    n, in_dim = x.shape
    da, db = wa.shape[1], wb.shape[1]

    # Sublane granularity: bf16 packs 2 rows per sublane -> min tile 16.
    sublane = 16 if wa.dtype == jnp.bfloat16 else 8

    # Big batch tiles (per-step overhead ~0.35us dominates small tiles), but
    # keep >= 2 grid steps so v7x's two TensorCores both get work.
    tb_cap = 4096 if tb is None else int(tb)
    if n <= sublane:
        tb_eff = n                                    # full-array block (legal)
    else:
        tb_eff = min(tb_cap, _round_up(pl.cdiv(n, 2), sublane))
        tb_eff = max(sublane, tb_eff)

    grid = (pl.cdiv(n, tb_eff),)                      # ragged last tile is fine:
    # rows are independent; OOB rows compute garbage that is never written back.

    return pl.pallas_call(
        _fused_mlp3_kernel,
        out_shape=jax.ShapeDtypeStruct((n, 1), jnp.float32),
        grid=grid,
        in_specs=[
            pl.BlockSpec((tb_eff, in_dim), lambda i: (i, 0)),   # activations: tiled
            pl.BlockSpec((in_dim, da), lambda i: (0, 0)),       # weights: resident
            pl.BlockSpec((da, db), lambda i: (0, 0)),
            pl.BlockSpec((db, 1), lambda i: (0, 0)),
            pl.BlockSpec(bias_pack.shape, lambda i: (0, 0)),
        ],
        out_specs=pl.BlockSpec((tb_eff, 1), lambda i: (i, 0)),  # lane width 1 == full dim
        compiler_params=pltpu.CompilerParams(
            dimension_semantics=("parallel",)),                 # megacore on v7x
    )(x, wa, wb, wc, bias_pack)


def prepare_branch_params(params, with_context, param_dtype=jnp.float32):
    """One-time host-side weight folding / packing (do NOT redo per forward call)."""
    p = params
    if with_context:
        wa, ba = p["wc"], p["bc"]
        # Length-1 key softmax == 1 -> attention = out_proj(v_proj(c_enc));
        # fold v_proj -> out_proj -> value_head[0] (all linear) into one weight.
        # (Only divergence vs PyTorch: if q·k overflowed to inf, PyTorch's
        #  softmax would emit NaN; the folded constant 1 stays finite.)
        wb = p["wv"] @ p["wo"] @ p["w1"]
        bb = (p["bv"] @ p["wo"] + p["bo"]) @ p["w1"] + p["b1"]
    else:
        wa, ba = p["ws"], p["bs"]
        wb, bb = p["w1"], p["b1"]
    wc, bc = p["w2"], p["b2"]

    da, db = wa.shape[1], wb.shape[1]
    bw = max(da, db, 1)
    bias_pack = jnp.zeros((3, bw), jnp.float32)       # biases stay f32
    bias_pack = bias_pack.at[0, :da].set(ba.reshape(-1))
    bias_pack = bias_pack.at[1, :db].set(bb.reshape(-1))
    bias_pack = bias_pack.at[2, :1].set(bc.reshape(-1))

    return {
        "wa": wa.astype(param_dtype),
        "wb": wb.astype(param_dtype),
        "wc": wc.astype(param_dtype),
        "bias_pack": bias_pack,
    }


def context_aware_value_forward(state, context, params, *, tb=None,
                                param_dtype=jnp.float32, prepared=None):
    """Mirrors ContextAwareValueFunction.forward (eval mode).

    For repeated serving, call prepare_branch_params() once and pass the
    result via `prepared=` (or wrap this call in jit so folding constant-folds).
    """
    if context is None:
        prep = prepared or prepare_branch_params(params, False, param_dtype)
        x = state
    else:
        prep = prepared or prepare_branch_params(params, True, param_dtype)
        x = context
    return _fused_forward(x, prep["wa"], prep["wb"], prep["wc"],
                          prep["bias_pack"], tb=tb)


# --------------------------- parameters / reference ---------------------------

def _xavier(key, shape):
    bound = math.sqrt(6.0 / (shape[0] + shape[1]))
    return jax.random.uniform(key, shape, jnp.float32, -bound, bound)


def init_params(key, state_dim, context_dim, hidden_dim):
    h2 = hidden_dim // 2
    ks = jax.random.split(key, 9)
    zeros = lambda *s: jnp.zeros(s, jnp.float32)
    return {
        # encoders
        "ws": _xavier(ks[0], (state_dim, hidden_dim)), "bs": zeros(1, hidden_dim),
        "wc": _xavier(ks[1], (context_dim, hidden_dim)), "bc": zeros(1, hidden_dim),
        # MultiheadAttention in_proj (q/k are dead in eval forward) + out_proj
        "wq": _xavier(ks[2], (hidden_dim, hidden_dim)), "bq": zeros(1, hidden_dim),
        "wk": _xavier(ks[3], (hidden_dim, hidden_dim)), "bk": zeros(1, hidden_dim),
        "wv": _xavier(ks[4], (hidden_dim, hidden_dim)), "bv": zeros(1, hidden_dim),
        "wo": _xavier(ks[5], (hidden_dim, hidden_dim)), "bo": zeros(1, hidden_dim),
        # value head
        "w1": _xavier(ks[6], (hidden_dim, h2)), "b1": zeros(1, h2),
        "w2": _xavier(ks[7], (h2, 1)), "b2": zeros(1, 1),
    }


def reference_forward(state, context, p):
    """Plain-JAX reference mirroring the PyTorch forward (eval mode)."""
    s = jax.nn.relu(state @ p["ws"] + p["bs"])
    if context is None:
        h1 = jax.nn.relu(s @ p["w1"] + p["b1"])
        return h1 @ p["w2"] + p["b2"]
    c = jax.nn.relu(context @ p["wc"] + p["bc"])
    q = s @ p["wq"] + p["bq"]
    k = c @ p["wk"] + p["bk"]
    v = c @ p["wv"] + p["bv"]
    n, hid = q.shape
    dh = hid // NUM_HEADS
    qh = q.reshape(n, NUM_HEADS, dh) * (1.0 / math.sqrt(dh))
    kh = k.reshape(n, NUM_HEADS, dh)
    vh = v.reshape(n, NUM_HEADS, dh)
    scores = jnp.sum(qh * kh, axis=-1, keepdims=True)      # key length == 1
    w = jax.nn.softmax(scores, axis=-1)
    att = (w * vh).reshape(n, hid)
    o = att @ p["wo"] + p["bo"]
    h1 = jax.nn.relu(o @ p["w1"] + p["b1"])
    return h1 @ p["w2"] + p["b2"]


# TODO(synk): training-mode Dropout(0.1) is not implemented (forward is eval-mode,
# where dropout is the identity).

if __name__ == "__main__":
    # Small shapes consistent with the module (hidden divisible by 8 heads).
    BATCH, STATE_DIM, CONTEXT_DIM, HIDDEN_DIM = 16, 64, 32, 32

    key = jax.random.PRNGKey(0)
    k_state, k_ctx, k_params = jax.random.split(key, 3)
    state = jax.random.normal(k_state, (BATCH, STATE_DIM), jnp.float32)
    context = jax.random.normal(k_ctx, (BATCH, CONTEXT_DIM), jnp.float32)
    params = init_params(k_params, STATE_DIM, CONTEXT_DIM, HIDDEN_DIM)

    # Context branch: prepare (fold) once, then run.  With BATCH=16 the tile
    # chooser picks tb=8 -> 2 grid steps, exercising the pipelined grid.
    prep_ctx = prepare_branch_params(params, with_context=True)
    out = context_aware_value_forward(state, context, params, prepared=prep_ctx)
    out = jax.block_until_ready(out)
    ref = reference_forward(state, context, params)
    assert out.shape == (BATCH, 1)
    assert jnp.allclose(out, ref, atol=1e-3, rtol=1e-3), "context branch mismatch"

    # context_features=None branch (state encoder -> value head).
    prep_nc = prepare_branch_params(params, with_context=False)
    out_nc = context_aware_value_forward(state, None, params, prepared=prep_nc)
    out_nc = jax.block_until_ready(out_nc)
    ref_nc = reference_forward(state, None, params)
    assert out_nc.shape == (BATCH, 1)
    assert jnp.allclose(out_nc, ref_nc, atol=1e-3, rtol=1e-3), "no-context branch mismatch"

    print("KERNEL_OK")
</pallas_src>

<mosaic_0001>
module attributes {stable_mosaic.version = 11 : i64} {
  func.func @_fused_mlp3_kernel(%arg0: i32, %arg1: memref<8x32xf32, #tpu.memory_space<vmem>>, %arg2: memref<32x32xf32, #tpu.memory_space<vmem>>, %arg3: memref<32x16xf32, #tpu.memory_space<vmem>>, %arg4: memref<16x1xf32, #tpu.memory_space<vmem>>, %arg5: memref<3x32xf32, #tpu.memory_space<vmem>>, %arg6: memref<8x1xf32, #tpu.memory_space<vmem>>) attributes {dimension_semantics = [#tpu.dimension_semantics<parallel>], iteration_bounds = array<i64: 2>, scalar_prefetch = 0 : i64, scratch_operands = 0 : i64, tpu.core_type = #tpu.core_type<tc>, window_params = [{transform_indices = @transform_0, window_bounds = array<i64: 8, 32>}, {pipeline_mode = #tpu.pipeline_mode<synchronous>, transform_indices = @transform_1, window_bounds = array<i64: 32, 32>}, {pipeline_mode = #tpu.pipeline_mode<synchronous>, transform_indices = @transform_2, window_bounds = array<i64: 32, 16>}, {pipeline_mode = #tpu.pipeline_mode<synchronous>, transform_indices = @transform_3, window_bounds = array<i64: 16, 1>}, {pipeline_mode = #tpu.pipeline_mode<synchronous>, transform_indices = @transform_4, window_bounds = array<i64: 3, 32>}, {transform_indices = @transform_5, window_bounds = array<i64: 8, 1>}]} {
    %c0 = arith.constant 0 : index
    %c0_0 = arith.constant 0 : index
    %0 = vector.load %arg5[%c0, %c0_0] : memref<3x32xf32, #tpu.memory_space<vmem>>, vector<1x32xf32>
    %c1 = arith.constant 1 : index
    %c0_1 = arith.constant 0 : index
    %1 = vector.load %arg5[%c1, %c0_1] : memref<3x32xf32, #tpu.memory_space<vmem>>, vector<1x16xf32>
    %c2 = arith.constant 2 : index
    %c0_2 = arith.constant 0 : index
    %2 = vector.load %arg5[%c2, %c0_2] : memref<3x32xf32, #tpu.memory_space<vmem>>, vector<1x1xf32>
    %c0_3 = arith.constant 0 : index
    %c0_4 = arith.constant 0 : index
    %3 = vector.load %arg1[%c0_3, %c0_4] : memref<8x32xf32, #tpu.memory_space<vmem>>, vector<8x32xf32>
    %c0_5 = arith.constant 0 : index
    %c0_6 = arith.constant 0 : index
    %4 = vector.load %arg2[%c0_5, %c0_6] : memref<32x32xf32, #tpu.memory_space<vmem>>, vector<32x32xf32>
    %cst = arith.constant dense<0.000000e+00> : vector<8x32xf32>
    %5 = tpu.matmul %3, %4, %cst {dimension_numbers = #tpu.dot_dimension_numbers<[1], [0], [0], [1], [0, 0, 1, 1], [], []>} : vector<8x32xf32>, vector<32x32xf32>, vector<8x32xf32> -> vector<8x32xf32>
    %6 = vector.broadcast %0 : vector<1x32xf32> to vector<8x32xf32>
    %7 = arith.addf %5, %6 : vector<8x32xf32>
    %cst_7 = arith.constant 0.000000e+00 : f32
    %8 = vector.broadcast %cst_7 : f32 to vector<8x32xf32>
    %9 = arith.maximumf %7, %8 : vector<8x32xf32>
    %c0_8 = arith.constant 0 : index
    %c0_9 = arith.constant 0 : index
    %10 = vector.load %arg3[%c0_8, %c0_9] : memref<32x16xf32, #tpu.memory_space<vmem>>, vector<32x16xf32>
    %cst_10 = arith.constant dense<0.000000e+00> : vector<8x16xf32>
    %11 = tpu.matmul %9, %10, %cst_10 {dimension_numbers = #tpu.dot_dimension_numbers<[1], [0], [0], [1], [0, 0, 1, 1], [], []>} : vector<8x32xf32>, vector<32x16xf32>, vector<8x16xf32> -> vector<8x16xf32>
    %12 = vector.broadcast %1 : vector<1x16xf32> to vector<8x16xf32>
    %13 = arith.addf %11, %12 : vector<8x16xf32>
    %cst_11 = arith.constant 0.000000e+00 : f32
    %14 = vector.broadcast %cst_11 : f32 to vector<8x16xf32>
    %15 = arith.maximumf %13, %14 : vector<8x16xf32>
    %c0_12 = arith.constant 0 : index
    %c0_13 = arith.constant 0 : index
    %16 = vector.load %arg4[%c0_12, %c0_13] : memref<16x1xf32, #tpu.memory_space<vmem>>, vector<16x1xf32>
    %cst_14 = arith.constant dense<0.000000e+00> : vector<8x1xf32>
    %17 = tpu.matmul %15, %16, %cst_14 {dimension_numbers = #tpu.dot_dimension_numbers<[1], [0], [0], [1], [0, 0, 1, 1], [], []>} : vector<8x16xf32>, vector<16x1xf32>, vector<8x1xf32> -> vector<8x1xf32>
    %18 = vector.broadcast %2 : vector<1x1xf32> to vector<8x1xf32>
    %19 = arith.addf %17, %18 : vector<8x1xf32>
    %c0_15 = arith.constant 0 : index
    %c0_16 = arith.constant 0 : index
    %20 = vector.load %arg6[%c0_15, %c0_16] : memref<8x1xf32, #tpu.memory_space<vmem>>, vector<8x1xf32>
    tpu.vector_store %arg6[%c0_15, %c0_16], %19 {strides = array<i32>} : memref<8x1xf32, #tpu.memory_space<vmem>>, vector<8x1xf32>,
    return
  }
  func.func @transform_0(%arg0: i32) -> (i32, i32) {
    %c0_i32 = arith.constant 0 : i32
    %c0_i32_0 = arith.constant 0 : i32
    return %arg0, %c0_i32 : i32, i32
  }
  func.func @transform_1(%arg0: i32) -> (i32, i32) {
    %c0_i32 = arith.constant 0 : i32
    %c0_i32_0 = arith.constant 0 : i32
    %c0_i32_1 = arith.constant 0 : i32
    return %c0_i32, %c0_i32_0 : i32, i32
  }
  func.func @transform_2(%arg0: i32) -> (i32, i32) {
    %c0_i32 = arith.constant 0 : i32
    %c0_i32_0 = arith.constant 0 : i32
    %c0_i32_1 = arith.constant 0 : i32
    return %c0_i32, %c0_i32_0 : i32, i32
  }
  func.func @transform_3(%arg0: i32) -> (i32, i32) {
    %c0_i32 = arith.constant 0 : i32
    %c0_i32_0 = arith.constant 0 : i32
    %c0_i32_1 = arith.constant 0 : i32
    return %c0_i32, %c0_i32_0 : i32, i32
  }
  func.func @transform_4(%arg0: i32) -> (i32, i32) {
    %c0_i32 = arith.constant 0 : i32
    %c0_i32_0 = arith.constant 0 : i32
    %c0_i32_1 = arith.constant 0 : i32
    return %c0_i32, %c0_i32_0 : i32, i32
  }
  func.func @transform_5(%arg0: i32) -> (i32, i32) {
    %c0_i32 = arith.constant 0 : i32
    %c0_i32_0 = arith.constant 0 : i32
    return %arg0, %c0_i32 : i32, i32
  }
}

</mosaic_0001>

<llo_original>
// kernel: tpu_custom_call.1
$region0: #{tpu_custom_call.1}
  #allocation0 [shape = 'u32[]', space=smem, size = 0x4, offset = 0x4, fixed_abs, tag = 'smem constant byte address 0x4 - core index']
  #allocation1 [shape = 'u32[144,128]{1,0:T(1,128)}', space=vmem, size = 0x12000, scoped, tag = 'internal scratch']
  %s0 = inlined_call_operand.vmem [shape: f32[16,32], index: 0, kind: input, shape index: {}]
  %s1 = inlined_call_operand.vmem [shape: f32[32,32], index: 1, kind: input, shape index: {}]
  %s2 = inlined_call_operand.vmem [shape: f32[32,16], index: 2, kind: input, shape index: {}]
  %s3 = inlined_call_operand.vmem [shape: f32[16,1], index: 3, kind: input, shape index: {}]
  %s4 = inlined_call_operand.vmem [shape: f32[3,32], index: 4, kind: input, shape index: {}]
  %s5 = inlined_call_operand.vmem [shape: f32[16,1], index: 5, kind: output, shape index: {}]
  %s6 = sld [smem:[#allocation0]]
  $region53: #{tpu_custom_call.1} parent=0
    _
  %s8 = ssub.s32 1, %s6
  %s9 = scalar_select 0, %s8, %s6
  loop: start=0, step=1, limit=4
  $region2: #{tpu_custom_call.1} parent=0 // loop_pre_header
    _
  $region3: #{tpu_custom_call.1} parent=0 // loop_header
    %s11 = sphi 0, %s15
    %p12 = scmp.ge.s32.totalorder %s11, 4
    %s21 = sphi 0, %s23
    %s24 = sphi 0, %s21
    %s25 = sphi 0, %s24
    %s41 = sphi 0, %s25
    %s45 = sphi 0, %s45
    %s47 = sphi 0, %s45
    %s48 = sphi 0, %s47
    %s62 = sphi 0, %s48
    %s66 = sphi 0, %s66
    %s68 = sphi 0, %s66
    %s69 = sphi 0, %s68
    %s83 = sphi 0, %s69
    %s87 = sphi 0, %s87
    %s89 = sphi 0, %s87
    %s90 = sphi 0, %s89
    %s104 = sphi 0, %s90
    %s108 = sphi 0, %s108
    %s110 = sphi 0, %s108
    %s111 = sphi 0, %s110
    %s125 = sphi 0, %s111
    %s131 = sphi 0, %s133
    %s134 = sphi 0, %s131
    %s135 = sphi 0, %s134
    %s151 = sphi 0, %s135
  $region4: #{tpu_custom_call.1} parent=0 // loop_header_branch
    %14 = sbr.rel (%p12) target = $region8
  $region5: #{tpu_custom_call.1} parent=0 // loop_body
    %s16 = ssub.s32 %s11, 1
    %s17 = ssub.s32 %s11, 2
    %s18 = sadd.s32 %s11, 1
    %s19 = ssub.s32 %s11, %s18
    %p20 = scmp.eq.s32.totalorder %s19, 0
    %s22 = sadd.s32 %s21, 1
    %s23 = scalar_select %p20, %s21, %s22
    %p26 = pneg %p20
    %p27 = scmp.eq.s32.totalorder %s11, 1
    %p28 = por %p26, %p27
    %p29 = scmp.ne.s32.totalorder %s21, %s24
    %p30 = scmp.eq.s32.totalorder %s11, 0
    %p31 = por %p29, %p30
    %p32 = scmp.ne.s32.totalorder %s21, %s24
    %p33 = scmp.eq.s32.totalorder %s16, 1
    %p34 = por %p32, %p33
    %p35 = scmp.ne.s32.totalorder %s24, %s25
    %p36 = scmp.eq.s32.totalorder %s16, 0
    %p37 = por %p35, %p36
    %p38 = scmp.ne.s32.totalorder %s24, %s25
    %p39 = scmp.eq.s32.totalorder %s17, 1
    %p40 = por %p38, %p39
    %p42 = scmp.ne.s32.totalorder %s25, %s41
    %p43 = scmp.eq.s32.totalorder %s17, 0
    %p44 = por %p42, %p43
    %s46 = sadd.s32 %s45, 1
    %p49 = scmp.eq.s32.totalorder %s11, 1
    %p50 = scmp.ne.s32.totalorder %s45, %s47
    %p51 = scmp.eq.s32.totalorder %s11, 0
    %p52 = por %p50, %p51
    %p53 = scmp.ne.s32.totalorder %s45, %s47
    %p54 = scmp.eq.s32.totalorder %s16, 1
    %p55 = por %p53, %p54
    %p56 = scmp.ne.s32.totalorder %s47, %s48
    %p57 = scmp.eq.s32.totalorder %s16, 0
    %p58 = por %p56, %p57
    %p59 = scmp.ne.s32.totalorder %s47, %s48
    %p60 = scmp.eq.s32.totalorder %s17, 1
    %p61 = por %p59, %p60
    %p63 = scmp.ne.s32.totalorder %s48, %s62
    %p64 = scmp.eq.s32.totalorder %s17, 0
    %p65 = por %p63, %p64
    %s67 = sadd.s32 %s66, 1
    %p70 = scmp.eq.s32.totalorder %s11, 1
    %p71 = scmp.ne.s32.totalorder %s66, %s68
    %p72 = scmp.eq.s32.totalorder %s11, 0
    %p73 = por %p71, %p72
    %p74 = scmp.ne.s32.totalorder %s66, %s68
    %p75 = scmp.eq.s32.totalorder %s16, 1
    %p76 = por %p74, %p75
    %p77 = scmp.ne.s32.totalorder %s68, %s69
    %p78 = scmp.eq.s32.totalorder %s16, 0
    %p79 = por %p77, %p78
    %p80 = scmp.ne.s32.totalorder %s68, %s69
    %p81 = scmp.eq.s32.totalorder %s17, 1
    %p82 = por %p80, %p81
    %p84 = scmp.ne.s32.totalorder %s69, %s83
    %p85 = scmp.eq.s32.totalorder %s17, 0
    %p86 = por %p84, %p85
    %s88 = sadd.s32 %s87, 1
    %p91 = scmp.eq.s32.totalorder %s11, 1
    %p92 = scmp.ne.s32.totalorder %s87, %s89
    %p93 = scmp.eq.s32.totalorder %s11, 0
    %p94 = por %p92, %p93
    %p95 = scmp.ne.s32.totalorder %s87, %s89
    %p96 = scmp.eq.s32.totalorder %s16, 1
    %p97 = por %p95, %p96
    %p98 = scmp.ne.s32.totalorder %s89, %s90
    %p99 = scmp.eq.s32.totalorder %s16, 0
    %p100 = por %p98, %p99
    %p101 = scmp.ne.s32.totalorder %s89, %s90
    %p102 = scmp.eq.s32.totalorder %s17, 1
    %p103 = por %p101, %p102
    %p105 = scmp.ne.s32.totalorder %s90, %s104
    %p106 = scmp.eq.s32.totalorder %s17, 0
    %p107 = por %p105, %p106
    %s109 = sadd.s32 %s108, 1
    %p112 = scmp.eq.s32.totalorder %s11, 1
    %p113 = scmp.ne.s32.totalorder %s108, %s110
    %p114 = scmp.eq.s32.totalorder %s11, 0
    %p115 = por %p113, %p114
    %p116 = scmp.ne.s32.totalorder %s108, %s110
    %p117 = scmp.eq.s32.totalorder %s16, 1
    %p118 = por %p116, %p117
    %p119 = scmp.ne.s32.totalorder %s110, %s111
    %p120 = scmp.eq.s32.totalorder %s16, 0
    %p121 = por %p119, %p120
    %p122 = scmp.ne.s32.totalorder %s110, %s111
    %p123 = scmp.eq.s32.totalorder %s17, 1
    %p124 = por %p122, %p123
    %p126 = scmp.ne.s32.totalorder %s111, %s125
    %p127 = scmp.eq.s32.totalorder %s17, 0
    %p128 = por %p126, %p127
    %s129 = ssub.s32 %s11, %s18
    %p130 = scmp.eq.s32.totalorder %s129, 0
    %s132 = sadd.s32 %s131, 1
    %s133 = scalar_select %p130, %s131, %s132
    %p136 = pneg %p130
    %p137 = scmp.eq.s32.totalorder %s11, 1
    %p138 = por %p136, %p137
    %p139 = scmp.ne.s32.totalorder %s131, %s134
    %p140 = scmp.eq.s32.totalorder %s11, 0
    %p141 = por %p139, %p140
    %p142 = scmp.ne.s32.totalorder %s131, %s134
    %p143 = scmp.eq.s32.totalorder %s16, 1
    %p144 = por %p142, %p143
    %p145 = scmp.ne.s32.totalorder %s134, %s135
    %p146 = scmp.eq.s32.totalorder %s16, 0
    %p147 = por %p145, %p146
    %p148 = scmp.ne.s32.totalorder %s134, %s135
    %p149 = scmp.eq.s32.totalorder %s17, 1
    %p150 = por %p148, %p149
    %p152 = scmp.ne.s32.totalorder %s135, %s151
    %p153 = scmp.eq.s32.totalorder %s17, 0
    %p154 = por %p152, %p153
    %p155 = scmp.le.s32.totalorder 1, %s11
    %p156 = scmp.lt.s32.totalorder %s11, 3
    %p157 = pnand %p155, %p156
    %p158 = pneg %p157
    // Predicated region
    $region9: #{tpu_custom_call.1} parent=5 // pred_check
      _
    $region10: #{tpu_custom_call.1} parent=5 // pred_check_branch
      %160 = sbr.rel (%p157) target = $region12
    $region11: #{tpu_custom_call.1} parent=5 // pred_region
      %s161 = ssub.s32 %s11, 1
      // Predicated region
      $region13: #{tpu_custom_call.1} parent=11 // pred_check
        %p162 = pneg %p58
      $region14: #{tpu_custom_call.1} parent=11 // pred_check_branch
        %164 = sbr.rel (%p162) target = $region16
      $region15: #{tpu_custom_call.1} parent=11 // pred_region
        _
      $region16: #{tpu_custom_call.1} parent=11 // pred_fallthru
        _
      // Predicated region
      $region17: #{tpu_custom_call.1} parent=11 // pred_check
        %p165 = pneg %p79
      $region18: #{tpu_custom_call.1} parent=11 // pred_check_branch
        %167 = sbr.rel (%p165) target = $region20
      $region19: #{tpu_custom_call.1} parent=11 // pred_region
        _
      $region20: #{tpu_custom_call.1} parent=11 // pred_fallthru
        _
      // Predicated region
      $region21: #{tpu_custom_call.1} parent=11 // pred_check
        %p168 = pneg %p100
      $region22: #{tpu_custom_call.1} parent=11 // pred_check_branch
        %170 = sbr.rel (%p168) target = $region24
      $region23: #{tpu_custom_call.1} parent=11 // pred_region
        _
      $region24: #{tpu_custom_call.1} parent=11 // pred_fallthru
        _
      // Predicated region
      $region25: #{tpu_custom_call.1} parent=11 // pred_check
        %p171 = pneg %p121
      $region26: #{tpu_custom_call.1} parent=11 // pred_check_branch
        %173 = sbr.rel (%p171) target = $region28
      $region27: #{tpu_custom_call.1} parent=11 // pred_region
        _
      $region28: #{tpu_custom_call.1} parent=11 // pred_fallthru
        _
    $region12: #{tpu_custom_call.1} parent=5 // pred_fallthru
      _
    %p174 = scmp.lt.s32.totalorder %s11, 2
    // Predicated region
    $region29: #{tpu_custom_call.1} parent=5 // pred_check
      %p175 = pneg %p174
    $region30: #{tpu_custom_call.1} parent=5 // pred_check_branch
      %177 = sbr.rel (%p175) target = $region32
    $region31: #{tpu_custom_call.1} parent=5 // pred_region
      // Predicated region
      $region33: #{tpu_custom_call.1} parent=31 // pred_check
        %p178 = pneg %p31
      $region34: #{tpu_custom_call.1} parent=31 // pred_check_branch
        %180 = sbr.rel (%p178) target = $region36
      $region35: #{tpu_custom_call.1} parent=31 // pred_region
        %p181 = scmp.lt.s32.totalorder %s11, 1
        %s182 = scalar_select %p181, %s11, 1
        %s183 = smul.addr %s182, 8
        %s184 = scalar_lea.vmem %s0, %s183
      $region36: #{tpu_custom_call.1} parent=31 // pred_fallthru
        _
    $region32: #{tpu_custom_call.1} parent=5 // pred_fallthru
      _
    %p185 = scmp.le.s32.totalorder 1, %s11
    %p186 = scmp.lt.s32.totalorder %s11, 3
    %p187 = pnand %p185, %p186
    %p188 = pneg %p187
    // Predicated region
    $region37: #{tpu_custom_call.1} parent=5 // pred_check
      _
    $region38: #{tpu_custom_call.1} parent=5 // pred_check_branch
      %190 = sbr.rel (%p187) target = $region40
    $region39: #{tpu_custom_call.1} parent=5 // pred_region
      %s191 = ssub.s32 %s11, 1
      %p192 = scmp.lt.s32.totalorder %s16, 1
      %s193 = scalar_select %p192, %s16, 1
      %s194 = smul.addr %s193, 8
      %s195 = scalar_lea.vmem %s0, %s194
      %p196 = pneg %p37
      %p197 = pneg %p34
      %p198 = pneg %p58
      %p199 = pneg %p55
      %p200 = pneg %p79
      %p201 = pneg %p76
      %p202 = pneg %p100
      %p203 = pneg %p97
      %p204 = pneg %p121
      %p205 = pneg %p118
      %p206 = pneg %p147
      %p207 = pneg %p144
      %p208 = scmp.lt.s32.totalorder %s16, 1
      %s209 = scalar_select %p208, %s16, 1
      %s210 = smul.addr %s209, 8
      %s211 = scalar_lea.vmem %s5, %s210
      %p212 = scmp.lt.s32.totalorder %s16, 1
      %s213 = scalar_select %p212, %s16, 1
      %s214 = smul.addr %s213, 8
      %s215 = scalar_lea.vmem %s0, %s214
      %p216 = scmp.lt.s32.totalorder %s16, 1
      %s217 = scalar_select %p216, %s16, 1
      %s218 = smul.addr %s217, 8
      %s219 = scalar_lea.vmem %s5, %s218
      %v220 = vld [vmem:[%s4] sm:$0x1]
      %v221 = vld [vmem:[%s4 + $0x1] sm:$0x1]
      %v222 = vld [vmem:[%s4 + $0x2] sm:$0x1]
      %v223 = vld [vmem:[%s215] sm:$0xff]
      %v224 = vld [vmem:[%s1] sm:$0xff]
      %v225 = vld [vmem:[%s1 + $0x8] sm:$0xff]
      %v226 = vld [vmem:[%s1 + $0x10] sm:$0xff]
      %v227 = vld [vmem:[%s1 + $0x18] sm:$0xff]
      %v228 = vlaneseq
      %v229 = vshrl.u32 %v228, 7
      %v230 = vsub.s32 0, %v229
      %v231 = vrot.slane %v220, %v230
      %vm232 = vcmask 261120
      %v234 = vsel %vm232, %v223, 0
      %236 = vmatprep.subr.mxu0 0.0
      %237 = vmatpush1.msra.mxu0 %v224
      %238 = vmatprep.subr.mxu0 0.0
      %239 = vmatpush1.msra.mxu0 %v225
      %240 = vmatprep.subr.mxu0 0.0
      %241 = vmatpush1.msra.mxu0 %v226
      %242 = vmatprep.subr.mxu0 0.0
      %243 = vmatpush1.msra.mxu0 %v227
      %244 = vmatprep.subr.mxu0 0.0
      %245 = vmatpush1.msra.mxu0 0.0
      %246 = vmatprep.subr.mxu0 0.0
      %247 = vmatpush1.msra.mxu0 0.0
      %248 = vmatprep.subr.mxu0 0.0
      %249 = vmatpush1.msra.mxu0 0.0
      %250 = vmatprep.subr.mxu0 0.0
      %251 = vmatpush1.msra.mxu0 0.0
      %252 = vmatprep.subr.mxu0 0.0
      %253 = vmatpush1.msra.mxu0 0.0
      %254 = vmatprep.subr.mxu0 0.0
      %255 = vmatpush1.msra.mxu0 0.0
      %256 = vmatprep.subr.mxu0 0.0
      %257 = vmatpush1.msra.mxu0 0.0
      %258 = vmatprep.subr.mxu0 0.0
      %259 = vmatpush1.msra.mxu0 0.0
      %260 = vmatprep.subr.mxu0 0.0
      %261 = vmatpush1.msra.mxu0 0.0
      %262 = vmatprep.subr.mxu0 0.0
      %263 = vmatpush1.msra.mxu0 0.0
      %264 = vmatprep.subr.mxu0 0.0
      %265 = vmatpush1.msra.mxu0 0.0
      %266 = vmatprep.subr.mxu0 0.0
      %267 = vmatpush1.msra.mxu0 0.0
      %268 = vmatprep.subr.mxu0 0.0
      %269 = vmatpush1.msra.mxu0 0.0
      %270 = vmatprep.subr.mxu0 0.0
      %271 = vmatpush1.msra.mxu0 0.0
      %272 = vmatprep.subr.mxu0 0.0
      %273 = vmatpush1.msra.mxu0 0.0
      %274 = vmatprep.subr.mxu0 0.0
      %275 = vmatpush1.msra.mxu0 0.0
      %276 = vmatprep.subr.mxu0 0.0
      %277 = vmatpush1.msra.mxu0 0.0
      %278 = vmatprep.subr.mxu0 0.0
      %279 = vmatpush1.msra.mxu0 0.0
      %280 = vmatprep.subr.mxu0 0.0
      %281 = vmatpush1.msra.mxu0 0.0
      %282 = vmatprep.subr.mxu0 0.0
      %283 = vmatpush1.msra.mxu0 0.0
      %284 = vmatprep.subr.mxu0 0.0
      %285 = vmatpush1.msra.mxu0 0.0
      %286 = vmatprep.subr.mxu0 0.0
      %287 = vmatpush1.msra.mxu0 0.0
      %288 = vmatprep.subr.mxu0 0.0
      %289 = vmatpush1.msra.mxu0 0.0
      %290 = vmatprep.subr.mxu0 0.0
      %291 = vmatpush1.msra.mxu0 0.0
      %292 = vmatprep.subr.mxu0 0.0
      %293 = vmatpush1.msra.mxu0 0.0
      %294 = vmatprep.subr.mxu0 0.0
      %295 = vmatpush1.msra.mxu0 0.0
      %296 = vmatprep.subr.mxu0 0.0
      %297 = vmatpush1.msra.mxu0 0.0
      %298 = vmatprep.subr.mxu0 0.0
      %299 = vmatpush1.msra.mxu0 0.0
      %300 = vmatprep.mubr.f32.mxu0 0.0
      %301 = vmatmul.mubr.f32.gmra.mrb[0].mxu0 %v234
      %v302 = vpop.f32.mrb[0].mxu0
      %v303 = vadd.f32 %v231, %v302
      %v304 = vpop.f32.mrb[0].mxu0
      %305 = vdwg.mxu0
      %v306 = vmax.f32 %v303, 0.0
      %v307 = vld [vmem:[%s2] sm:$0xff]
      %v308 = vld [vmem:[%s2 + $0x8] sm:$0xff]
      %v309 = vld [vmem:[%s2 + $0x10] sm:$0xff]
      %v310 = vld [vmem:[%s2 + $0x18] sm:$0xff]
      %v311 = vlaneseq
      %v312 = vshrl.u32 %v311, 7
      %v313 = vsub.s32 0, %v312
      %v314 = vrot.slane %v221, %v313
      %v316 = vsel %vm232, %v306, 0
      %318 = vmatprep.subr.mxu0 0.0
      %319 = vmatpush1.msra.mxu0 %v307
      %320 = vmatprep.subr.mxu0 0.0
      %321 = vmatpush1.msra.mxu0 %v308
      %322 = vmatprep.subr.mxu0 0.0
      %323 = vmatpush1.msra.mxu0 %v309
      %324 = vmatprep.subr.mxu0 0.0
      %325 = vmatpush1.msra.mxu0 %v310
      %326 = vmatprep.subr.mxu0 0.0
      %327 = vmatpush1.msra.mxu0 0.0
      %328 = vmatprep.subr.mxu0 0.0
      %329 = vmatpush1.msra.mxu0 0.0
      %330 = vmatprep.subr.mxu0 0.0
      %331 = vmatpush1.msra.mxu0 0.0
      %332 = vmatprep.subr.mxu0 0.0
      %333 = vmatpush1.msra.mxu0 0.0
      %334 = vmatprep.subr.mxu0 0.0
      %335 = vmatpush1.msra.mxu0 0.0
      %336 = vmatprep.subr.mxu0 0.0
      %337 = vmatpush1.msra.mxu0 0.0
      %338 = vmatprep.subr.mxu0 0.0
      %339 = vmatpush1.msra.mxu0 0.0
      %340 = vmatprep.subr.mxu0 0.0
      %341 = vmatpush1.msra.mxu0 0.0
      %342 = vmatprep.subr.mxu0 0.0
      %343 = vmatpush1.msra.mxu0 0.0
      %344 = vmatprep.subr.mxu0 0.0
      %345 = vmatpush1.msra.mxu0 0.0
      %346 = vmatprep.subr.mxu0 0.0
      %347 = vmatpush1.msra.mxu0 0.0
      %348 = vmatprep.subr.mxu0 0.0
      %349 = vmatpush1.msra.mxu0 0.0
      %350 = vmatprep.subr.mxu0 0.0
      %351 = vmatpush1.msra.mxu0 0.0
      %352 = vmatprep.subr.mxu0 0.0
      %353 = vmatpush1.msra.mxu0 0.0
      %354 = vmatprep.subr.mxu0 0.0
      %355 = vmatpush1.msra.mxu0 0.0
      %356 = vmatprep.subr.mxu0 0.0
      %357 = vmatpush1.msra.mxu0 0.0
      %358 = vmatprep.subr.mxu0 0.0
      %359 = vmatpush1.msra.mxu0 0.0
      %360 = vmatprep.subr.mxu0 0.0
      %361 = vmatpush1.msra.mxu0 0.0
      %362 = vmatprep.subr.mxu0 0.0
      %363 = vmatpush1.msra.mxu0 0.0
      %364 = vmatprep.subr.mxu0 0.0
      %365 = vmatpush1.msra.mxu0 0.0
      %366 = vmatprep.subr.mxu0 0.0
      %367 = vmatpush1.msra.mxu0 0.0
      %368 = vmatprep.subr.mxu0 0.0
      %369 = vmatpush1.msra.mxu0 0.0
      %370 = vmatprep.subr.mxu0 0.0
      %371 = vmatpush1.msra.mxu0 0.0
      %372 = vmatprep.subr.mxu0 0.0
      %373 = vmatpush1.msra.mxu0 0.0
      %374 = vmatprep.subr.mxu0 0.0
      %375 = vmatpush1.msra.mxu0 0.0
      %376 = vmatprep.subr.mxu0 0.0
      %377 = vmatpush1.msra.mxu0 0.0
      %378 = vmatprep.subr.mxu0 0.0
      %379 = vmatpush1.msra.mxu0 0.0
      %380 = vmatprep.subr.mxu0 0.0
      %381 = vmatpush1.msra.mxu0 0.0
      %382 = vmatprep.mubr.f32.mxu0 0.0
      %383 = vmatmul.mubr.f32.gmra.mrb[0].mxu0 %v316
      %v384 = vpop.f32.mrb[0].mxu0
      %v385 = vadd.f32 %v314, %v384
      %v386 = vpop.f32.mrb[0].mxu0
      %387 = vdwg.mxu0
      %v388 = vmax.f32 %v385, 0.0
      %v389 = vld [vmem:[%s3] sm:$0xff]
      %v390 = vld [vmem:[%s3 + $0x8] sm:$0xff]
      %v391 = vlaneseq
      %v392 = vshrl.u32 %v391, 7
      %v393 = vsub.s32 0, %v392
      %v394 = vrot.slane %v222, %v393
      %vm395 = vcmask 130048
      %v397 = vsel %vm395, %v388, 0
      %399 = vmatprep.subr.mxu0 0.0
      %400 = vmatpush1.msra.mxu0 %v389
      %401 = vmatprep.subr.mxu0 0.0
      %402 = vmatpush1.msra.mxu0 %v390
      %403 = vmatprep.subr.mxu0 0.0
      %404 = vmatpush1.msra.mxu0 0.0
      %405 = vmatprep.subr.mxu0 0.0
      %406 = vmatpush1.msra.mxu0 0.0
      %407 = vmatprep.subr.mxu0 0.0
      %408 = vmatpush1.msra.mxu0 0.0
      %409 = vmatprep.subr.mxu0 0.0
      %410 = vmatpush1.msra.mxu0 0.0
      %411 = vmatprep.subr.mxu0 0.0
      %412 = vmatpush1.msra.mxu0 0.0
      %413 = vmatprep.subr.mxu0 0.0
      %414 = vmatpush1.msra.mxu0 0.0
      %415 = vmatprep.subr.mxu0 0.0
      %416 = vmatpush1.msra.mxu0 0.0
      %417 = vmatprep.subr.mxu0 0.0
      %418 = vmatpush1.msra.mxu0 0.0
      %419 = vmatprep.subr.mxu0 0.0
      %420 = vmatpush1.msra.mxu0 0.0
      %421 = vmatprep.subr.mxu0 0.0
      %422 = vmatpush1.msra.mxu0 0.0
      %423 = vmatprep.subr.mxu0 0.0
      %424 = vmatpush1.msra.mxu0 0.0
      %425 = vmatprep.subr.mxu0 0.0
      %426 = vmatpush1.msra.mxu0 0.0
      %427 = vmatprep.subr.mxu0 0.0
      %428 = vmatpush1.msra.mxu0 0.0
      %429 = vmatprep.subr.mxu0 0.0
      %430 = vmatpush1.msra.mxu0 0.0
      %431 = vmatprep.subr.mxu0 0.0
      %432 = vmatpush1.msra.mxu0 0.0
      %433 = vmatprep.subr.mxu0 0.0
      %434 = vmatpush1.msra.mxu0 0.0
      %435 = vmatprep.subr.mxu0 0.0
      %436 = vmatpush1.msra.mxu0 0.0
      %437 = vmatprep.subr.mxu0 0.0
      %438 = vmatpush1.msra.mxu0 0.0
      %439 = vmatprep.subr.mxu0 0.0
      %440 = vmatpush1.msra.mxu0 0.0
      %441 = vmatprep.subr.mxu0 0.0
      %442 = vmatpush1.msra.mxu0 0.0
      %443 = vmatprep.subr.mxu0 0.0
      %444 = vmatpush1.msra.mxu0 0.0
      %445 = vmatprep.subr.mxu0 0.0
      %446 = vmatpush1.msra.mxu0 0.0
      %447 = vmatprep.subr.mxu0 0.0
      %448 = vmatpush1.msra.mxu0 0.0
      %449 = vmatprep.subr.mxu0 0.0
      %450 = vmatpush1.msra.mxu0 0.0
      %451 = vmatprep.subr.mxu0 0.0
      %452 = vmatpush1.msra.mxu0 0.0
      %453 = vmatprep.subr.mxu0 0.0
      %454 = vmatpush1.msra.mxu0 0.0
      %455 = vmatprep.subr.mxu0 0.0
      %456 = vmatpush1.msra.mxu0 0.0
      %457 = vmatprep.subr.mxu0 0.0
      %458 = vmatpush1.msra.mxu0 0.0
      %459 = vmatprep.subr.mxu0 0.0
      %460 = vmatpush1.msra.mxu0 0.0
      %461 = vmatprep.subr.mxu0 0.0
      %462 = vmatpush1.msra.mxu0 0.0
      %463 = vmatprep.mubr.f32.mxu0 0.0
      %464 = vmatmul.mubr.f32.gmra.mrb[0].mxu0 %v397
      %v465 = vpop.f32.mrb[0].mxu0
      %v466 = vadd.f32 %v394, %v465
      %v467 = vpop.f32.mrb[0].mxu0
      %468 = vdwg.mxu0
      %vm469 = vcmask 7168
      %470 = vst.msk [vmem:[%s219] sm:$0xff] %vm469, %v466
      %p471 = scmp.lt.s32.totalorder %s16, 1
      %s472 = scalar_select %p471, %s16, 1
      %s473 = smul.addr %s472, 8
      %s474 = scalar_lea.vmem %s5, %s473
      // Predicated region
      $region41: #{tpu_custom_call.1} parent=39 // pred_check
        %p475 = pneg %p144
      $region42: #{tpu_custom_call.1} parent=39 // pred_check_branch
        %477 = sbr.rel (%p475) target = $region44
      $region43: #{tpu_custom_call.1} parent=39 // pred_region
        _
      $region44: #{tpu_custom_call.1} parent=39 // pred_fallthru
        _
    $region40: #{tpu_custom_call.1} parent=5 // pred_fallthru
      _
    %p478 = scmp.le.s32.totalorder 2, %s11
    // Predicated region
    $region45: #{tpu_custom_call.1} parent=5 // pred_check
      %p479 = pneg %p478
    $region46: #{tpu_custom_call.1} parent=5 // pred_check_branch
      %481 = sbr.rel (%p479) target = $region48
    $region47: #{tpu_custom_call.1} parent=5 // pred_region
      %s482 = ssub.s32 %s11, 2
      // Predicated region
      $region49: #{tpu_custom_call.1} parent=47 // pred_check
        %p483 = pneg %p150
      $region50: #{tpu_custom_call.1} parent=47 // pred_check_branch
        %485 = sbr.rel (%p483) target = $region52
      $region51: #{tpu_custom_call.1} parent=47 // pred_region
        %p486 = scmp.lt.s32.totalorder %s17, 1
        %s487 = scalar_select %p486, %s17, 1
        %s488 = smul.addr %s487, 8
        %s489 = scalar_lea.vmem %s5, %s488
      $region52: #{tpu_custom_call.1} parent=47 // pred_fallthru
        _
    $region48: #{tpu_custom_call.1} parent=5 // pred_fallthru
      _
  $region6: #{tpu_custom_call.1} parent=0 // loop_footer
    %s15 = sadd.s32 1, %s11
  $region7: #{tpu_custom_call.1} parent=0 // loop_footer_branch
    %10 = sbr.rel target = $region3
  $region8: #{tpu_custom_call.1} parent=0 // loop_exit
    _

</llo_original>
